<compile_context>
chip_gen: v6e
topology: v6e:2x2x1
jax: 0.10.0
libtpu: 0.0.40
codegen_flags: <defaults>
</compile_context>

<pallas_src>
import functools

import jax
import jax.numpy as jnp
from jax.experimental import pallas as pl
from jax.experimental.pallas import tpu as pltpu


def _round_up(x, m):
    return ((x + m - 1) // m) * m


def _cdiv(a, b):
    return (a + b - 1) // b


def _rtn_kernel(x1_ref, x2_ref, noise_ref, we_ref, be_ref, wd_ref, bd_ref,
                y_ref, *, A, Cc):
    """Fused encode -> sigmoid*A -> MAC channel (+noise) -> fused decode for one batch tile."""
    we = we_ref[...]                                      # (2, Cin, Cc) f32

    # ---- encoders: two MXU matmuls (K=Cin, N=Cc), f32 accumulation ----
    e1 = jnp.dot(x1_ref[...], we[0], preferred_element_type=jnp.float32)
    e2 = jnp.dot(x2_ref[...], we[1], preferred_element_type=jnp.float32)

    # Fuse the VPU/EUP work onto a single wider (tb, 2*Cc) slab: one bias add,
    # one sigmoid, then fold the two halves together for the MAC channel.
    e = jnp.concatenate([e1, e2], axis=-1) + be_ref[...]  # (tb, 2*Cc) f32
    s = jax.nn.sigmoid(e)
    signal = (s[:, :Cc] + s[:, Cc:]) * A + noise_ref[...].astype(jnp.float32)

    # ---- fused decoders: one MXU matmul with a contiguous (tb, 2*Cin) store ----
    y = jnp.dot(signal, wd_ref[...], preferred_element_type=jnp.float32) + bd_ref[...]
    y_ref[...] = y.astype(y_ref.dtype)


def prepare_params(params, param_dtype=jnp.float32):
    """Fuse the four Linear layers once per parameter set (hoisted out of forward)."""
    f = lambda a: jnp.asarray(a, param_dtype)
    return dict(
        w_enc=jnp.stack([f(params["we1"]), f(params["we2"])], axis=0),        # (2, Cin, Cc)
        b_enc=jnp.concatenate([f(params["be1"]), f(params["be2"])], axis=1),  # (1, 2*Cc)
        w_dec=jnp.concatenate([f(params["wd1"]), f(params["wd2"])], axis=1),  # (Cc, 2*Cin)
        b_dec=jnp.concatenate([f(params["bd1"]), f(params["bd2"])], axis=1),  # (1, 2*Cin)
    )


def _default_block_rows():
    """Per-generation batch tile (review); safe fallback on unknown backends."""
    try:
        kind = jax.devices()[0].device_kind.lower()
    except Exception:
        return 4096
    if "v5 lite" in kind or "v5e" in kind or "v5litepod" in kind:
        return 2048          # v5e: stay comfortably inside scoped VMEM at f32
    if "v6" in kind or "v7" in kind:
        return 8192          # v6e/v7x: amortize ~0.35us/grid-step at 1.4-3.2 TB/s
    return 4096


def rtn_forward(x1, x2, fused_params, noise, A=2.9, *, block_rows=None):
    """Fused RTNBase.forward (channel_mode='mac', fading=False). Returns (y1, y2).

    x1, x2 : (B, Cin) activations; f32 or bf16 (bf16 halves HBM traffic; weights
             and MXU accumulation stay f32).
    noise  : (B, Cc) N(0,1) channel noise, explicit input (see header note).
    """
    B, Cin = x1.shape
    Cc = fused_params["w_dec"].shape[0]
    io_dtype = x1.dtype
    itemsize = jnp.dtype(io_dtype).itemsize
    nbytes = jnp.dtype(noise.dtype).itemsize

    if block_rows is None:
        block_rows = _default_block_rows()

    # Row tile: sublane-aligned for the I/O dtype; when B fits a single tile we
    # still try to expose >= 2 grid steps so v7x megacore can split the
    # "parallel" batch axis (a harmless no-op on single-TC v5e/v6e).
    row_align = 16 if itemsize == 2 else 8
    if B <= block_rows:
        if B > 2 * row_align:
            half = _round_up(_cdiv(B, 2), row_align)
            tb = half if half < B else B
        else:
            tb = B
    else:
        tb = _round_up(block_rows, row_align)
    grid = (_cdiv(B, tb),)

    # Explicit VMEM budget from lane-padded (last dim -> 128) footprints:
    # double-buffered pipeline tiles + grid-invariant weights + f32 temporaries.
    lane = lambda n: _round_up(n, 128)
    per_row_pipe = (2 * lane(Cin) * itemsize         # x1, x2 tiles
                    + lane(Cc) * nbytes              # noise tile
                    + lane(2 * Cin) * itemsize)      # y tile
    pipe_bytes = 2 * tb * per_row_pipe               # double-buffered
    w_bytes = 2 * 4 * (2 * Cin * lane(Cc) + lane(2 * Cc)
                       + Cc * lane(2 * Cin) + lane(2 * Cin))
    tmp_bytes = tb * 4 * (2 * lane(Cc) + 2 * lane(2 * Cc)
                          + lane(Cc) + lane(2 * Cin))
    vmem_limit = int(1.15 * (pipe_bytes + w_bytes + tmp_bytes)) + (2 << 20)
    vmem_limit = max(32 * 1024 * 1024, min(vmem_limit, 100 * 1024 * 1024))

    bytes_io = (2 * B * Cin + B * 2 * Cin) * itemsize + B * Cc * nbytes
    bytes_w = 4 * (2 * Cin * Cc + 2 * Cc + Cc * 2 * Cin + 2 * Cin)

    kernel = functools.partial(_rtn_kernel, A=A, Cc=Cc)

    y_cat = pl.pallas_call(
        kernel,
        out_shape=jax.ShapeDtypeStruct((B, 2 * Cin), io_dtype),
        grid_spec=pltpu.PrefetchScalarGridSpec(
            num_scalar_prefetch=0,
            grid=grid,
            in_specs=[
                pl.BlockSpec((tb, Cin), lambda i: (i, 0)),          # x1 tile
                pl.BlockSpec((tb, Cin), lambda i: (i, 0)),          # x2 tile
                pl.BlockSpec((tb, Cc), lambda i: (i, 0)),           # noise tile
                pl.BlockSpec((2, Cin, Cc), lambda i: (0, 0, 0)),    # enc weights
                pl.BlockSpec((1, 2 * Cc), lambda i: (0, 0)),        # enc biases
                pl.BlockSpec((Cc, 2 * Cin), lambda i: (0, 0)),      # dec weights
                pl.BlockSpec((1, 2 * Cin), lambda i: (0, 0)),       # dec biases
            ],
            out_specs=pl.BlockSpec((tb, 2 * Cin), lambda i: (i, 0)),
        ),
        compiler_params=pltpu.CompilerParams(
            dimension_semantics=("parallel",),
            vmem_limit_bytes=vmem_limit),
        cost_estimate=pl.CostEstimate(
            flops=8 * B * Cin * Cc,
            transcendentals=2 * B * Cc,
            bytes_accessed=bytes_io + bytes_w),
    )(x1, x2, noise, fused_params["w_enc"], fused_params["b_enc"],
      fused_params["w_dec"], fused_params["b_dec"])

    # Split the fused decoder output back into (y1, y2).
    return y_cat[:, :Cin], y_cat[:, Cin:]


def init_params(key, in_channels, compressed_dim):
    """PyTorch-style Linear init (uniform +-1/sqrt(fan_in)); weights stored (in, out)."""
    ks = jax.random.split(key, 8)

    def lin(kw, kb, fan_in, fan_out):
        bound = 1.0 / jnp.sqrt(fan_in)
        w = jax.random.uniform(kw, (fan_in, fan_out), jnp.float32, -bound, bound)
        b = jax.random.uniform(kb, (1, fan_out), jnp.float32, -bound, bound)
        return w, b

    we1, be1 = lin(ks[0], ks[1], in_channels, compressed_dim)
    we2, be2 = lin(ks[2], ks[3], in_channels, compressed_dim)
    wd1, bd1 = lin(ks[4], ks[5], compressed_dim, in_channels)
    wd2, bd2 = lin(ks[6], ks[7], compressed_dim, in_channels)
    return dict(we1=we1, be1=be1, we2=we2, be2=be2,
                wd1=wd1, bd1=bd1, wd2=wd2, bd2=bd2)


def rtn_reference(x1, x2, params, noise, A=2.9):
    """Pure-JAX reference matching RTNBase.forward (mac, no fading)."""
    x1 = x1.astype(jnp.float32)
    x2 = x2.astype(jnp.float32)
    e1 = x1 @ params["we1"] + params["be1"]
    e2 = x2 @ params["we2"] + params["be2"]
    signal = jax.nn.sigmoid(e1) * A + jax.nn.sigmoid(e2) * A + noise.astype(jnp.float32)
    y1 = signal @ params["wd1"] + params["bd1"]
    y2 = signal @ params["wd2"] + params["bd2"]
    return y1, y2


if __name__ == "__main__":
    in_channels, compressed_dim, batch = 32, 16, 32

    key = jax.random.PRNGKey(0)
    k_x1, k_x2, k_n, k_params = jax.random.split(key, 4)

    x1 = jax.random.normal(k_x1, (batch, in_channels), jnp.float32)
    x2 = jax.random.normal(k_x2, (batch, in_channels), jnp.float32)
    noise = jax.random.normal(k_n, (batch, compressed_dim), jnp.float32)
    raw_params = init_params(k_params, in_channels, compressed_dim)
    fused_params = prepare_params(raw_params)

    r1, r2 = rtn_reference(x1, x2, raw_params, noise, A=2.9)

    # 1) f32, forced multi-step grid (block_rows=8 -> 4 grid steps): exact check
    #    of the fused encode/channel/decode math against the pure-JAX reference.
    y1, y2 = rtn_forward(x1, x2, fused_params, noise, A=2.9, block_rows=8)
    jax.block_until_ready((y1, y2))
    assert y1.shape == (batch, in_channels) and y2.shape == (batch, in_channels)
    assert jnp.allclose(y1, r1, atol=1e-5), "decoder1 output mismatch"
    assert jnp.allclose(y2, r2, atol=1e-5), "decoder2 output mismatch"

    # 2) f32, default per-generation tile sizing (megacore-friendly 2-step grid).
    y1d, y2d = rtn_forward(x1, x2, fused_params, noise, A=2.9)
    jax.block_until_ready((y1d, y2d))
    assert jnp.allclose(y1d, r1, atol=1e-5) and jnp.allclose(y2d, r2, atol=1e-5)

    # 3) bf16 activations / noise / output (halves HBM traffic, weights stay f32);
    #    loose check against the f32 reference.
    x1_b = x1.astype(jnp.bfloat16)
    x2_b = x2.astype(jnp.bfloat16)
    noise_b = noise.astype(jnp.bfloat16)
    y1b, y2b = rtn_forward(x1_b, x2_b, fused_params, noise_b, A=2.9)
    jax.block_until_ready((y1b, y2b))
    assert y1b.dtype == jnp.bfloat16 and y2b.dtype == jnp.bfloat16
    y1b_f = y1b.astype(jnp.float32)
    y2b_f = y2b.astype(jnp.float32)
    assert bool(jnp.all(jnp.isfinite(y1b_f))) and bool(jnp.all(jnp.isfinite(y2b_f)))
    assert float(jnp.max(jnp.abs(y1b_f - r1))) < 0.25, "bf16 decoder1 drifted too far"
    assert float(jnp.max(jnp.abs(y2b_f - r2))) < 0.25, "bf16 decoder2 drifted too far"

    print("KERNEL_OK")
</pallas_src>

<mosaic_0001>
module attributes {stable_mosaic.version = 11 : i64} {
  func.func @_rtn_kernel(%arg0: i32, %arg1: memref<8x32xf32, #tpu.memory_space<vmem>>, %arg2: memref<8x32xf32, #tpu.memory_space<vmem>>, %arg3: memref<8x16xf32, #tpu.memory_space<vmem>>, %arg4: memref<2x32x16xf32, #tpu.memory_space<vmem>>, %arg5: memref<1x32xf32, #tpu.memory_space<vmem>>, %arg6: memref<16x64xf32, #tpu.memory_space<vmem>>, %arg7: memref<1x64xf32, #tpu.memory_space<vmem>>, %arg8: memref<8x64xf32, #tpu.memory_space<vmem>>) attributes {dimension_semantics = [#tpu.dimension_semantics<parallel>], iteration_bounds = array<i64: 4>, scalar_prefetch = 0 : i64, scratch_operands = 0 : i64, tpu.core_type = #tpu.core_type<tc>, window_params = [{transform_indices = @transform_0, window_bounds = array<i64: 8, 32>}, {transform_indices = @transform_1, window_bounds = array<i64: 8, 32>}, {transform_indices = @transform_2, window_bounds = array<i64: 8, 16>}, {pipeline_mode = #tpu.pipeline_mode<synchronous>, transform_indices = @transform_3, window_bounds = array<i64: 2, 32, 16>}, {pipeline_mode = #tpu.pipeline_mode<synchronous>, transform_indices = @transform_4, window_bounds = array<i64: 1, 32>}, {pipeline_mode = #tpu.pipeline_mode<synchronous>, transform_indices = @transform_5, window_bounds = array<i64: 16, 64>}, {pipeline_mode = #tpu.pipeline_mode<synchronous>, transform_indices = @transform_6, window_bounds = array<i64: 1, 64>}, {transform_indices = @transform_7, window_bounds = array<i64: 8, 64>}]} {
    %c0 = arith.constant 0 : index
    %c0_0 = arith.constant 0 : index
    %c0_1 = arith.constant 0 : index
    %0 = vector.load %arg4[%c0, %c0_0, %c0_1] : memref<2x32x16xf32, #tpu.memory_space<vmem>>, vector<2x32x16xf32>
    %c0_2 = arith.constant 0 : index
    %c0_3 = arith.constant 0 : index
    %1 = vector.load %arg1[%c0_2, %c0_3] : memref<8x32xf32, #tpu.memory_space<vmem>>, vector<8x32xf32>
    %2 = vector.extract_strided_slice %0 {offsets = [0, 0, 0], sizes = [1, 32, 16], strides = [1, 1, 1]} : vector<2x32x16xf32> to vector<1x32x16xf32>
    %3 = vector.shape_cast %2 : vector<1x32x16xf32> to vector<32x16xf32>
    %cst = arith.constant dense<0.000000e+00> : vector<8x16xf32>
    %4 = tpu.matmul %1, %3, %cst {dimension_numbers = #tpu.dot_dimension_numbers<[1], [0], [0], [1], [0, 0, 1, 1], [], []>} : vector<8x32xf32>, vector<32x16xf32>, vector<8x16xf32> -> vector<8x16xf32>
    %c0_4 = arith.constant 0 : index
    %c0_5 = arith.constant 0 : index
    %5 = vector.load %arg2[%c0_4, %c0_5] : memref<8x32xf32, #tpu.memory_space<vmem>>, vector<8x32xf32>
    %6 = vector.extract_strided_slice %0 {offsets = [1, 0, 0], sizes = [1, 32, 16], strides = [1, 1, 1]} : vector<2x32x16xf32> to vector<1x32x16xf32>
    %7 = vector.shape_cast %6 : vector<1x32x16xf32> to vector<32x16xf32>
    %cst_6 = arith.constant dense<0.000000e+00> : vector<8x16xf32>
    %8 = tpu.matmul %5, %7, %cst_6 {dimension_numbers = #tpu.dot_dimension_numbers<[1], [0], [0], [1], [0, 0, 1, 1], [], []>} : vector<8x32xf32>, vector<32x16xf32>, vector<8x16xf32> -> vector<8x16xf32>
    %9 = tpu.concatenate %4, %8 in 1 : vector<8x16xf32>, vector<8x16xf32> -> vector<8x32xf32>
    %c0_7 = arith.constant 0 : index
    %c0_8 = arith.constant 0 : index
    %10 = vector.load %arg5[%c0_7, %c0_8] : memref<1x32xf32, #tpu.memory_space<vmem>>, vector<1x32xf32>
    %11 = vector.broadcast %10 : vector<1x32xf32> to vector<8x32xf32>
    %12 = arith.addf %9, %11 : vector<8x32xf32>
    %13 = arith.negf %12 : vector<8x32xf32>
    %14 = math.exp %13 : vector<8x32xf32>
    %cst_9 = arith.constant 1.000000e+00 : f32
    %15 = vector.broadcast %cst_9 : f32 to vector<8x32xf32>
    %16 = arith.addf %15, %14 : vector<8x32xf32>
    %17 = arith.divf %15, %16 : vector<8x32xf32>
    %18 = vector.extract_strided_slice %17 {offsets = [0, 0], sizes = [8, 16], strides = [1, 1]} : vector<8x32xf32> to vector<8x16xf32>
    %19 = vector.extract_strided_slice %17 {offsets = [0, 16], sizes = [8, 16], strides = [1, 1]} : vector<8x32xf32> to vector<8x16xf32>
    %20 = arith.addf %18, %19 : vector<8x16xf32>
    %cst_10 = arith.constant 2.900000e+00 : f32
    %21 = vector.broadcast %cst_10 : f32 to vector<8x16xf32>
    %22 = arith.mulf %20, %21 : vector<8x16xf32>
    %c0_11 = arith.constant 0 : index
    %c0_12 = arith.constant 0 : index
    %23 = vector.load %arg3[%c0_11, %c0_12] : memref<8x16xf32, #tpu.memory_space<vmem>>, vector<8x16xf32>
    %24 = arith.addf %22, %23 : vector<8x16xf32>
    %c0_13 = arith.constant 0 : index
    %c0_14 = arith.constant 0 : index
    %25 = vector.load %arg6[%c0_13, %c0_14] : memref<16x64xf32, #tpu.memory_space<vmem>>, vector<16x64xf32>
    %cst_15 = arith.constant dense<0.000000e+00> : vector<8x64xf32>
    %26 = tpu.matmul %24, %25, %cst_15 {dimension_numbers = #tpu.dot_dimension_numbers<[1], [0], [0], [1], [0, 0, 1, 1], [], []>} : vector<8x16xf32>, vector<16x64xf32>, vector<8x64xf32> -> vector<8x64xf32>
    %c0_16 = arith.constant 0 : index
    %c0_17 = arith.constant 0 : index
    %27 = vector.load %arg7[%c0_16, %c0_17] : memref<1x64xf32, #tpu.memory_space<vmem>>, vector<1x64xf32>
    %28 = vector.broadcast %27 : vector<1x64xf32> to vector<8x64xf32>
    %29 = arith.addf %26, %28 : vector<8x64xf32>
    %c0_18 = arith.constant 0 : index
    %c0_19 = arith.constant 0 : index
    %30 = vector.load %arg8[%c0_18, %c0_19] : memref<8x64xf32, #tpu.memory_space<vmem>>, vector<8x64xf32>
    tpu.vector_store %arg8[%c0_18, %c0_19], %29 {strides = array<i32>} : memref<8x64xf32, #tpu.memory_space<vmem>>, vector<8x64xf32>,
    return
  }
  func.func @transform_0(%arg0: i32) -> (i32, i32) {
    %c0_i32 = arith.constant 0 : i32
    %c0_i32_0 = arith.constant 0 : i32
    return %arg0, %c0_i32 : i32, i32
  }
  func.func @transform_1(%arg0: i32) -> (i32, i32) {
    %c0_i32 = arith.constant 0 : i32
    %c0_i32_0 = arith.constant 0 : i32
    return %arg0, %c0_i32 : i32, i32
  }
  func.func @transform_2(%arg0: i32) -> (i32, i32) {
    %c0_i32 = arith.constant 0 : i32
    %c0_i32_0 = arith.constant 0 : i32
    return %arg0, %c0_i32 : i32, i32
  }
  func.func @transform_3(%arg0: i32) -> (i32, i32, i32) {
    %c0_i32 = arith.constant 0 : i32
    %c0_i32_0 = arith.constant 0 : i32
    %c0_i32_1 = arith.constant 0 : i32
    %c0_i32_2 = arith.constant 0 : i32
    return %c0_i32, %c0_i32_0, %c0_i32_1 : i32, i32, i32
  }
  func.func @transform_4(%arg0: i32) -> (i32, i32) {
    %c0_i32 = arith.constant 0 : i32
    %c0_i32_0 = arith.constant 0 : i32
    %c0_i32_1 = arith.constant 0 : i32
    return %c0_i32, %c0_i32_0 : i32, i32
  }
  func.func @transform_5(%arg0: i32) -> (i32, i32) {
    %c0_i32 = arith.constant 0 : i32
    %c0_i32_0 = arith.constant 0 : i32
    %c0_i32_1 = arith.constant 0 : i32
    return %c0_i32, %c0_i32_0 : i32, i32
  }
  func.func @transform_6(%arg0: i32) -> (i32, i32) {
    %c0_i32 = arith.constant 0 : i32
    %c0_i32_0 = arith.constant 0 : i32
    %c0_i32_1 = arith.constant 0 : i32
    return %c0_i32, %c0_i32_0 : i32, i32
  }
  func.func @transform_7(%arg0: i32) -> (i32, i32) {
    %c0_i32 = arith.constant 0 : i32
    %c0_i32_0 = arith.constant 0 : i32
    return %arg0, %c0_i32 : i32, i32
  }
}

</mosaic_0001>

<llo_original>
// kernel: tpu_custom_call.1
$region0: #{tpu_custom_call.1}
  #allocation0 [shape = 'u32[]', space=smem, size = 0x4, offset = 0x4, fixed_abs, tag = 'smem constant byte address 0x4 - core index']
  #allocation1 [shape = 'u32[144,128]{1,0:T(1,128)}', space=vmem, size = 0x12000, scoped, tag = 'internal scratch']
  %s0 = inlined_call_operand.vmem [shape: f32[32,32], index: 0, kind: input, shape index: {}]
  %s1 = inlined_call_operand.vmem [shape: f32[32,32], index: 1, kind: input, shape index: {}]
  %s2 = inlined_call_operand.vmem [shape: f32[32,16], index: 2, kind: input, shape index: {}]
  %s3 = inlined_call_operand.vmem [shape: f32[2,32,16], index: 3, kind: input, shape index: {}]
  %s4 = inlined_call_operand.vmem [shape: f32[1,32], index: 4, kind: input, shape index: {}]
  %s5 = inlined_call_operand.vmem [shape: f32[16,64], index: 5, kind: input, shape index: {}]
  %s6 = inlined_call_operand.vmem [shape: f32[1,64], index: 6, kind: input, shape index: {}]
  %s7 = inlined_call_operand.hbm [shape: f32[32,64], index: 7, kind: output, shape index: {}]
  %s8 = sld [smem:[#allocation0]]
  $region61: #{tpu_custom_call.1} parent=0
    _
  %s10 = ssub.s32 1, %s8
  %s11 = scalar_select 0, %s10, %s8
  $region1: #{tpu_custom_call.1} parent=0
    #allocation2 [shape = 'u8[8192]{0}', space=vmem, size = 0x2000, scoped, tag = 'output window, operand 0']
    #allocation3 [shape = 's32[2]{0}', space=sflag, size = 0x8, scoped, tag = 'scoped memory for tpu_custom_call.1']
    %12 = vsyncpa [#allocation3], 0
    %s13 = scalar_lea.sflag [#allocation3], 1
    %14 = vsyncpa %s13, 0
    loop: start=0, step=1, limit=6
    $region2: #{tpu_custom_call.1} parent=1 // loop_pre_header
      _
    $region3: #{tpu_custom_call.1} parent=1 // loop_header
      %s16 = sphi 0, %s20
      %p17 = scmp.ge.s32.totalorder %s16, 6
      %s26 = sphi 0, %s28
      %s29 = sphi 0, %s26
      %s30 = sphi 0, %s29
      %s46 = sphi 0, %s30
      %s52 = sphi 0, %s54
      %s55 = sphi 0, %s52
      %s56 = sphi 0, %s55
      %s72 = sphi 0, %s56
      %s78 = sphi 0, %s80
      %s81 = sphi 0, %s78
      %s82 = sphi 0, %s81
      %s98 = sphi 0, %s82
      %s102 = sphi 0, %s102
      %s104 = sphi 0, %s102
      %s105 = sphi 0, %s104
      %s119 = sphi 0, %s105
      %s123 = sphi 0, %s123
      %s125 = sphi 0, %s123
      %s126 = sphi 0, %s125
      %s140 = sphi 0, %s126
      %s144 = sphi 0, %s144
      %s146 = sphi 0, %s144
      %s147 = sphi 0, %s146
      %s161 = sphi 0, %s147
      %s165 = sphi 0, %s165
      %s167 = sphi 0, %s165
      %s168 = sphi 0, %s167
      %s182 = sphi 0, %s168
      %s188 = sphi 0, %s190
      %s191 = sphi 0, %s188
      %s192 = sphi 0, %s191
      %s208 = sphi 0, %s192
    $region4: #{tpu_custom_call.1} parent=1 // loop_header_branch
      %19 = sbr.rel (%p17) target = $region8
    $region5: #{tpu_custom_call.1} parent=1 // loop_body
      %s21 = ssub.s32 %s16, 1
      %s22 = ssub.s32 %s16, 2
      %s23 = sadd.s32 %s16, 1
      %s24 = ssub.s32 %s16, %s23
      %p25 = scmp.eq.s32.totalorder %s24, 0
      %s27 = sadd.s32 %s26, 1
      %s28 = scalar_select %p25, %s26, %s27
      %p31 = pneg %p25
      %p32 = scmp.eq.s32.totalorder %s16, 3
      %p33 = por %p31, %p32
      %p34 = scmp.ne.s32.totalorder %s26, %s29
      %p35 = scmp.eq.s32.totalorder %s16, 0
      %p36 = por %p34, %p35
      %p37 = scmp.ne.s32.totalorder %s26, %s29
      %p38 = scmp.eq.s32.totalorder %s21, 3
      %p39 = por %p37, %p38
      %p40 = scmp.ne.s32.totalorder %s29, %s30
      %p41 = scmp.eq.s32.totalorder %s21, 0
      %p42 = por %p40, %p41
      %p43 = scmp.ne.s32.totalorder %s29, %s30
      %p44 = scmp.eq.s32.totalorder %s22, 3
      %p45 = por %p43, %p44
      %p47 = scmp.ne.s32.totalorder %s30, %s46
      %p48 = scmp.eq.s32.totalorder %s22, 0
      %p49 = por %p47, %p48
      %s50 = ssub.s32 %s16, %s23
      %p51 = scmp.eq.s32.totalorder %s50, 0
      %s53 = sadd.s32 %s52, 1
      %s54 = scalar_select %p51, %s52, %s53
      %p57 = pneg %p51
      %p58 = scmp.eq.s32.totalorder %s16, 3
      %p59 = por %p57, %p58
      %p60 = scmp.ne.s32.totalorder %s52, %s55
      %p61 = scmp.eq.s32.totalorder %s16, 0
      %p62 = por %p60, %p61
      %p63 = scmp.ne.s32.totalorder %s52, %s55
      %p64 = scmp.eq.s32.totalorder %s21, 3
      %p65 = por %p63, %p64
      %p66 = scmp.ne.s32.totalorder %s55, %s56
      %p67 = scmp.eq.s32.totalorder %s21, 0
      %p68 = por %p66, %p67
      %p69 = scmp.ne.s32.totalorder %s55, %s56
      %p70 = scmp.eq.s32.totalorder %s22, 3
      %p71 = por %p69, %p70
      %p73 = scmp.ne.s32.totalorder %s56, %s72
      %p74 = scmp.eq.s32.totalorder %s22, 0
      %p75 = por %p73, %p74
      %s76 = ssub.s32 %s16, %s23
      %p77 = scmp.eq.s32.totalorder %s76, 0
      %s79 = sadd.s32 %s78, 1
      %s80 = scalar_select %p77, %s78, %s79
      %p83 = pneg %p77
      %p84 = scmp.eq.s32.totalorder %s16, 3
      %p85 = por %p83, %p84
      %p86 = scmp.ne.s32.totalorder %s78, %s81
      %p87 = scmp.eq.s32.totalorder %s16, 0
      %p88 = por %p86, %p87
      %p89 = scmp.ne.s32.totalorder %s78, %s81
      %p90 = scmp.eq.s32.totalorder %s21, 3
      %p91 = por %p89, %p90
      %p92 = scmp.ne.s32.totalorder %s81, %s82
      %p93 = scmp.eq.s32.totalorder %s21, 0
      %p94 = por %p92, %p93
      %p95 = scmp.ne.s32.totalorder %s81, %s82
      %p96 = scmp.eq.s32.totalorder %s22, 3
      %p97 = por %p95, %p96
      %p99 = scmp.ne.s32.totalorder %s82, %s98
      %p100 = scmp.eq.s32.totalorder %s22, 0
      %p101 = por %p99, %p100
      %s103 = sadd.s32 %s102, 1
      %p106 = scmp.eq.s32.totalorder %s16, 3
      %p107 = scmp.ne.s32.totalorder %s102, %s104
      %p108 = scmp.eq.s32.totalorder %s16, 0
      %p109 = por %p107, %p108
      %p110 = scmp.ne.s32.totalorder %s102, %s104
      %p111 = scmp.eq.s32.totalorder %s21, 3
      %p112 = por %p110, %p111
      %p113 = scmp.ne.s32.totalorder %s104, %s105
      %p114 = scmp.eq.s32.totalorder %s21, 0
      %p115 = por %p113, %p114
      %p116 = scmp.ne.s32.totalorder %s104, %s105
      %p117 = scmp.eq.s32.totalorder %s22, 3
      %p118 = por %p116, %p117
      %p120 = scmp.ne.s32.totalorder %s105, %s119
      %p121 = scmp.eq.s32.totalorder %s22, 0
      %p122 = por %p120, %p121
      %s124 = sadd.s32 %s123, 1
      %p127 = scmp.eq.s32.totalorder %s16, 3
      %p128 = scmp.ne.s32.totalorder %s123, %s125
      %p129 = scmp.eq.s32.totalorder %s16, 0
      %p130 = por %p128, %p129
      %p131 = scmp.ne.s32.totalorder %s123, %s125
      %p132 = scmp.eq.s32.totalorder %s21, 3
      %p133 = por %p131, %p132
      %p134 = scmp.ne.s32.totalorder %s125, %s126
      %p135 = scmp.eq.s32.totalorder %s21, 0
      %p136 = por %p134, %p135
      %p137 = scmp.ne.s32.totalorder %s125, %s126
      %p138 = scmp.eq.s32.totalorder %s22, 3
      %p139 = por %p137, %p138
      %p141 = scmp.ne.s32.totalorder %s126, %s140
      %p142 = scmp.eq.s32.totalorder %s22, 0
      %p143 = por %p141, %p142
      %s145 = sadd.s32 %s144, 1
      %p148 = scmp.eq.s32.totalorder %s16, 3
      %p149 = scmp.ne.s32.totalorder %s144, %s146
      %p150 = scmp.eq.s32.totalorder %s16, 0
      %p151 = por %p149, %p150
      %p152 = scmp.ne.s32.totalorder %s144, %s146
      %p153 = scmp.eq.s32.totalorder %s21, 3
      %p154 = por %p152, %p153
      %p155 = scmp.ne.s32.totalorder %s146, %s147
      %p156 = scmp.eq.s32.totalorder %s21, 0
      %p157 = por %p155, %p156
      %p158 = scmp.ne.s32.totalorder %s146, %s147
      %p159 = scmp.eq.s32.totalorder %s22, 3
      %p160 = por %p158, %p159
      %p162 = scmp.ne.s32.totalorder %s147, %s161
      %p163 = scmp.eq.s32.totalorder %s22, 0
      %p164 = por %p162, %p163
      %s166 = sadd.s32 %s165, 1
      %p169 = scmp.eq.s32.totalorder %s16, 3
      %p170 = scmp.ne.s32.totalorder %s165, %s167
      %p171 = scmp.eq.s32.totalorder %s16, 0
      %p172 = por %p170, %p171
      %p173 = scmp.ne.s32.totalorder %s165, %s167
      %p174 = scmp.eq.s32.totalorder %s21, 3
      %p175 = por %p173, %p174
      %p176 = scmp.ne.s32.totalorder %s167, %s168
      %p177 = scmp.eq.s32.totalorder %s21, 0
      %p178 = por %p176, %p177
      %p179 = scmp.ne.s32.totalorder %s167, %s168
      %p180 = scmp.eq.s32.totalorder %s22, 3
      %p181 = por %p179, %p180
      %p183 = scmp.ne.s32.totalorder %s168, %s182
      %p184 = scmp.eq.s32.totalorder %s22, 0
      %p185 = por %p183, %p184
      %s186 = ssub.s32 %s16, %s23
      %p187 = scmp.eq.s32.totalorder %s186, 0
      %s189 = sadd.s32 %s188, 1
      %s190 = scalar_select %p187, %s188, %s189
      %p193 = pneg %p187
      %p194 = scmp.eq.s32.totalorder %s16, 3
      %p195 = por %p193, %p194
      %p196 = scmp.ne.s32.totalorder %s188, %s191
      %p197 = scmp.eq.s32.totalorder %s16, 0
      %p198 = por %p196, %p197
      %p199 = scmp.ne.s32.totalorder %s188, %s191
      %p200 = scmp.eq.s32.totalorder %s21, 3
      %p201 = por %p199, %p200
      %p202 = scmp.ne.s32.totalorder %s191, %s192
      %p203 = scmp.eq.s32.totalorder %s21, 0
      %p204 = por %p202, %p203
      %p205 = scmp.ne.s32.totalorder %s191, %s192
      %p206 = scmp.eq.s32.totalorder %s22, 3
      %p207 = por %p205, %p206
      %p209 = scmp.ne.s32.totalorder %s192, %s208
      %p210 = scmp.eq.s32.totalorder %s22, 0
      %p211 = por %p209, %p210
      %p212 = scmp.le.s32.totalorder 1, %s16
      %p213 = scmp.lt.s32.totalorder %s16, 5
      %p214 = pnand %p212, %p213
      %p215 = pneg %p214
      // Predicated region
      $region9: #{tpu_custom_call.1} parent=5 // pred_check
        _
      $region10: #{tpu_custom_call.1} parent=5 // pred_check_branch
        %217 = sbr.rel (%p214) target = $region12
      $region11: #{tpu_custom_call.1} parent=5 // pred_region
        %s218 = ssub.s32 %s16, 1
        // Predicated region
        $region13: #{tpu_custom_call.1} parent=11 // pred_check
          %p219 = pneg %p115
        $region14: #{tpu_custom_call.1} parent=11 // pred_check_branch
          %221 = sbr.rel (%p219) target = $region16
        $region15: #{tpu_custom_call.1} parent=11 // pred_region
          _
        $region16: #{tpu_custom_call.1} parent=11 // pred_fallthru
          _
        // Predicated region
        $region17: #{tpu_custom_call.1} parent=11 // pred_check
          %p222 = pneg %p136
        $region18: #{tpu_custom_call.1} parent=11 // pred_check_branch
          %224 = sbr.rel (%p222) target = $region20
        $region19: #{tpu_custom_call.1} parent=11 // pred_region
          _
        $region20: #{tpu_custom_call.1} parent=11 // pred_fallthru
          _
        // Predicated region
        $region21: #{tpu_custom_call.1} parent=11 // pred_check
          %p225 = pneg %p157
        $region22: #{tpu_custom_call.1} parent=11 // pred_check_branch
          %227 = sbr.rel (%p225) target = $region24
        $region23: #{tpu_custom_call.1} parent=11 // pred_region
          _
        $region24: #{tpu_custom_call.1} parent=11 // pred_fallthru
          _
        // Predicated region
        $region25: #{tpu_custom_call.1} parent=11 // pred_check
          %p228 = pneg %p178
        $region26: #{tpu_custom_call.1} parent=11 // pred_check_branch
          %230 = sbr.rel (%p228) target = $region28
        $region27: #{tpu_custom_call.1} parent=11 // pred_region
          _
        $region28: #{tpu_custom_call.1} parent=11 // pred_fallthru
          _
      $region12: #{tpu_custom_call.1} parent=5 // pred_fallthru
        _
      %p231 = scmp.lt.s32.totalorder %s16, 4
      // Predicated region
      $region29: #{tpu_custom_call.1} parent=5 // pred_check
        %p232 = pneg %p231
      $region30: #{tpu_custom_call.1} parent=5 // pred_check_branch
        %234 = sbr.rel (%p232) target = $region32
      $region31: #{tpu_custom_call.1} parent=5 // pred_region
        // Predicated region
        $region33: #{tpu_custom_call.1} parent=31 // pred_check
          %p235 = pneg %p36
        $region34: #{tpu_custom_call.1} parent=31 // pred_check_branch
          %237 = sbr.rel (%p235) target = $region36
        $region35: #{tpu_custom_call.1} parent=31 // pred_region
          %p238 = scmp.lt.s32.totalorder %s16, 3
          %s239 = scalar_select %p238, %s16, 3
          %s240 = smul.addr %s239, 8
          %s241 = scalar_lea.vmem %s0, %s240
        $region36: #{tpu_custom_call.1} parent=31 // pred_fallthru
          _
        // Predicated region
        $region37: #{tpu_custom_call.1} parent=31 // pred_check
          %p242 = pneg %p62
        $region38: #{tpu_custom_call.1} parent=31 // pred_check_branch
          %244 = sbr.rel (%p242) target = $region40
        $region39: #{tpu_custom_call.1} parent=31 // pred_region
          %p245 = scmp.lt.s32.totalorder %s16, 3
          %s246 = scalar_select %p245, %s16, 3
          %s247 = smul.addr %s246, 8
          %s248 = scalar_lea.vmem %s1, %s247
        $region40: #{tpu_custom_call.1} parent=31 // pred_fallthru
          _
        // Predicated region
        $region41: #{tpu_custom_call.1} parent=31 // pred_check
          %p249 = pneg %p88
        $region42: #{tpu_custom_call.1} parent=31 // pred_check_branch
          %251 = sbr.rel (%p249) target = $region44
        $region43: #{tpu_custom_call.1} parent=31 // pred_region
          %p252 = scmp.lt.s32.totalorder %s16, 3
          %s253 = scalar_select %p252, %s16, 3
          %s254 = smul.addr %s253, 8
          %s255 = scalar_lea.vmem %s2, %s254
        $region44: #{tpu_custom_call.1} parent=31 // pred_fallthru
          _
      $region32: #{tpu_custom_call.1} parent=5 // pred_fallthru
        _
      %p256 = scmp.le.s32.totalorder 1, %s16
      %p257 = scmp.lt.s32.totalorder %s16, 5
      %p258 = pnand %p256, %p257
      %p259 = pneg %p258
      // Predicated region
      $region45: #{tpu_custom_call.1} parent=5 // pred_check
        _
      $region46: #{tpu_custom_call.1} parent=5 // pred_check_branch
        %261 = sbr.rel (%p258) target = $region48
      $region47: #{tpu_custom_call.1} parent=5 // pred_region
        %s262 = ssub.s32 %s16, 1
        %p263 = scmp.lt.s32.totalorder %s21, 3
        %s264 = scalar_select %p263, %s21, 3
        %s265 = smul.addr %s264, 8
        %s266 = scalar_lea.vmem %s0, %s265
        %p267 = pneg %p42
        %p268 = pneg %p39
        %p269 = scmp.lt.s32.totalorder %s21, 3
        %s270 = scalar_select %p269, %s21, 3
        %s271 = smul.addr %s270, 8
        %s272 = scalar_lea.vmem %s1, %s271
        %p273 = pneg %p68
        %p274 = pneg %p65
        %p275 = scmp.lt.s32.totalorder %s21, 3
        %s276 = scalar_select %p275, %s21, 3
        %s277 = smul.addr %s276, 8
        %s278 = scalar_lea.vmem %s2, %s277
        %p279 = pneg %p94
        %p280 = pneg %p91
        %p281 = pneg %p115
        %p282 = pneg %p112
        %p283 = pneg %p136
        %p284 = pneg %p133
        %p285 = pneg %p157
        %p286 = pneg %p154
        %p287 = pneg %p178
        %p288 = pneg %p175
        %p289 = pneg %p204
        %p290 = pneg %p201
        %s291 = sand.u32 %s191, 1
        %s292 = scalar_lea.sflag [#allocation3], %s291
        %s293 = sand.u32 %s191, 1
        %s294 = smul.addr %s293, 8
        %s295 = scalar_lea.vmem [#allocation2], %s294
        %p296 = scmp.lt.s32.totalorder %s21, 3
        %s297 = scalar_select %p296, %s21, 3
        %s298 = smul.addr %s297, 8
        %s299 = scalar_lea.vmem %s0, %s298
        %p300 = scmp.lt.s32.totalorder %s21, 3
        %s301 = scalar_select %p300, %s21, 3
        %s302 = smul.addr %s301, 8
        %s303 = scalar_lea.vmem %s1, %s302
        %p304 = scmp.lt.s32.totalorder %s21, 3
        %s305 = scalar_select %p304, %s21, 3
        %s306 = smul.addr %s305, 8
        %s307 = scalar_lea.vmem %s2, %s306
        %v308 = vld [vmem:[%s3] sm:$0xff]
        %v309 = vld [vmem:[%s3 + $0x8] sm:$0xff]
        %v310 = vld [vmem:[%s3 + $0x10] sm:$0xff]
        %v311 = vld [vmem:[%s3 + $0x18] sm:$0xff]
        %v312 = vld [vmem:[%s3 + $0x20] sm:$0xff]
        %v313 = vld [vmem:[%s3 + $0x28] sm:$0xff]
        %v314 = vld [vmem:[%s3 + $0x30] sm:$0xff]
        %v315 = vld [vmem:[%s3 + $0x38] sm:$0xff]
        %v316 = vld [vmem:[%s299] sm:$0xff]
        %vm317 = vcmask 261120
        %v319 = vsel %vm317, %v316, 0
        %321 = vmatprep.subr.mxu0 0.0
        %322 = vmatpush1.msra.mxu0 0.0
        %323 = vmatprep.subr.mxu0 0.0
        %324 = vmatpush1.msra.mxu0 0.0
        %325 = vmatprep.subr.mxu0 0.0
        %326 = vmatpush1.msra.mxu0 0.0
        %327 = vmatprep.subr.mxu0 0.0
        %328 = vmatpush1.msra.mxu0 0.0
        %329 = vmatprep.subr.mxu0 0.0
        %330 = vmatpush1.msra.mxu0 0.0
        %331 = vmatprep.subr.mxu0 0.0
        %332 = vmatpush1.msra.mxu0 0.0
        %333 = vmatprep.subr.mxu0 0.0
        %334 = vmatpush1.msra.mxu0 0.0
        %335 = vmatprep.subr.mxu0 0.0
        %336 = vmatpush1.msra.mxu0 0.0
        %337 = vmatprep.subr.mxu0 0.0
        %338 = vmatpush1.msra.mxu0 0.0
        %339 = vmatprep.subr.mxu0 0.0
        %340 = vmatpush1.msra.mxu0 0.0
        %341 = vmatprep.subr.mxu0 0.0
        %342 = vmatpush1.msra.mxu0 0.0
        %343 = vmatprep.subr.mxu0 0.0
        %344 = vmatpush1.msra.mxu0 0.0
        %345 = vmatprep.subr.mxu0 0.0
        %346 = vmatpush1.msra.mxu0 %v311
        %347 = vmatprep.subr.mxu0 0.0
        %348 = vmatpush1.msra.mxu0 %v310
        %349 = vmatprep.subr.mxu0 0.0
        %350 = vmatpush1.msra.mxu0 %v309
        %351 = vmatprep.subr.mxu0 0.0
        %352 = vmatpush1.msra.mxu0 %v308
        %353 = vmatprep.subr.mxu0 0.0
        %354 = vmatpush2.msra.mxu0 0.0
        %355 = vmatprep.subr.mxu0 0.0
        %356 = vmatpush2.msra.mxu0 0.0
        %357 = vmatprep.subr.mxu0 0.0
        %358 = vmatpush2.msra.mxu0 0.0
        %359 = vmatprep.subr.mxu0 0.0
        %360 = vmatpush2.msra.mxu0 0.0
        %361 = vmatprep.subr.mxu0 0.0
        %362 = vmatpush2.msra.mxu0 0.0
        %363 = vmatprep.subr.mxu0 0.0
        %364 = vmatpush2.msra.mxu0 0.0
        %365 = vmatprep.subr.mxu0 0.0
        %366 = vmatpush2.msra.mxu0 0.0
        %367 = vmatprep.subr.mxu0 0.0
        %368 = vmatpush2.msra.mxu0 0.0
        %369 = vmatprep.subr.mxu0 0.0
        %370 = vmatpush2.msra.mxu0 0.0
        %371 = vmatprep.subr.mxu0 0.0
        %372 = vmatpush2.msra.mxu0 0.0
        %373 = vmatprep.subr.mxu0 0.0
        %374 = vmatpush2.msra.mxu0 0.0
        %375 = vmatprep.subr.mxu0 0.0
        %376 = vmatpush2.msra.mxu0 0.0
        %377 = vmatprep.subr.mxu0 0.0
        %378 = vmatpush2.msra.mxu0 0.0
        %379 = vmatprep.subr.mxu0 0.0
        %380 = vmatpush2.msra.mxu0 0.0
        %381 = vmatprep.subr.mxu0 0.0
        %382 = vmatpush2.msra.mxu0 0.0
        %383 = vmatprep.subr.mxu0 0.0
        %384 = vmatpush2.msra.mxu0 0.0
        %385 = vmatprep.mubr.f32.mxu0 0.0
        %386 = vmatmul.mubr.f32.gmra.mxu0 %v319
        %v387 = vpop.f32.mrf.mxu0
        %v388 = vadd.f32 0.0, %v387
        %v389 = vpop.f32.mrf.mxu0
        %390 = vdwg.mxu0
        %v391 = vld [vmem:[%s303] sm:$0xff]
        %v393 = vsel %vm317, %v391, 0
        %395 = vmatprep.subr.mxu0 0.0
        %396 = vmatpush1.msra.mxu0 0.0
        %397 = vmatprep.subr.mxu0 0.0
        %398 = vmatpush1.msra.mxu0 0.0
        %399 = vmatprep.subr.mxu0 0.0
        %400 = vmatpush1.msra.mxu0 0.0
        %401 = vmatprep.subr.mxu0 0.0
        %402 = vmatpush1.msra.mxu0 0.0
        %403 = vmatprep.subr.mxu0 0.0
        %404 = vmatpush1.msra.mxu0 0.0
        %405 = vmatprep.subr.mxu0 0.0
        %406 = vmatpush1.msra.mxu0 0.0
        %407 = vmatprep.subr.mxu0 0.0
        %408 = vmatpush1.msra.mxu0 0.0
        %409 = vmatprep.subr.mxu0 0.0
        %410 = vmatpush1.msra.mxu0 0.0
        %411 = vmatprep.subr.mxu0 0.0
        %412 = vmatpush1.msra.mxu0 0.0
        %413 = vmatprep.subr.mxu0 0.0
        %414 = vmatpush1.msra.mxu0 0.0
        %415 = vmatprep.subr.mxu0 0.0
        %416 = vmatpush1.msra.mxu0 0.0
        %417 = vmatprep.subr.mxu0 0.0
        %418 = vmatpush1.msra.mxu0 0.0
        %419 = vmatprep.subr.mxu0 0.0
        %420 = vmatpush1.msra.mxu0 %v315
        %421 = vmatprep.subr.mxu0 0.0
        %422 = vmatpush1.msra.mxu0 %v314
        %423 = vmatprep.subr.mxu0 0.0
        %424 = vmatpush1.msra.mxu0 %v313
        %425 = vmatprep.subr.mxu0 0.0
        %426 = vmatpush1.msra.mxu0 %v312
        %427 = vmatprep.subr.mxu0 0.0
        %428 = vmatpush2.msra.mxu0 0.0
        %429 = vmatprep.subr.mxu0 0.0
        %430 = vmatpush2.msra.mxu0 0.0
        %431 = vmatprep.subr.mxu0 0.0
        %432 = vmatpush2.msra.mxu0 0.0
        %433 = vmatprep.subr.mxu0 0.0
        %434 = vmatpush2.msra.mxu0 0.0
        %435 = vmatprep.subr.mxu0 0.0
        %436 = vmatpush2.msra.mxu0 0.0
        %437 = vmatprep.subr.mxu0 0.0
        %438 = vmatpush2.msra.mxu0 0.0
        %439 = vmatprep.subr.mxu0 0.0
        %440 = vmatpush2.msra.mxu0 0.0
        %441 = vmatprep.subr.mxu0 0.0
        %442 = vmatpush2.msra.mxu0 0.0
        %443 = vmatprep.subr.mxu0 0.0
        %444 = vmatpush2.msra.mxu0 0.0
        %445 = vmatprep.subr.mxu0 0.0
        %446 = vmatpush2.msra.mxu0 0.0
        %447 = vmatprep.subr.mxu0 0.0
        %448 = vmatpush2.msra.mxu0 0.0
        %449 = vmatprep.subr.mxu0 0.0
        %450 = vmatpush2.msra.mxu0 0.0
        %451 = vmatprep.subr.mxu0 0.0
        %452 = vmatpush2.msra.mxu0 0.0
        %453 = vmatprep.subr.mxu0 0.0
        %454 = vmatpush2.msra.mxu0 0.0
        %455 = vmatprep.subr.mxu0 0.0
        %456 = vmatpush2.msra.mxu0 0.0
        %457 = vmatprep.subr.mxu0 0.0
        %458 = vmatpush2.msra.mxu0 0.0
        %459 = vmatprep.mubr.f32.mxu0 0.0
        %460 = vmatmul.mubr.f32.gmra.mxu0 %v393
        %v461 = vpop.f32.mrf.mxu0
        %v462 = vadd.f32 0.0, %v461
        %v463 = vpop.f32.mrf.mxu0
        %464 = vdwg.mxu0
        %466 = vrot.lane.b32.xlu0 %v462, 16
        %v467 = vpop.permute.xlu0 %466
        %vm469 = vcmask 130048
        %v470 = vsel %vm469, %v388, %v467
        %v471 = vld [vmem:[%s4] sm:$0x1]
        %v473 = vlaneseq
        %v474 = vshrl.u32 %v473, 7
        %v475 = vsub.s32 0, %v474
        %v476 = vrot.slane %v471, %v475
        %v478 = vadd.f32 %v470, %v476
        %v479 = vxor.u32 %v478, 2147483648
        %v480 = vmul.f32 %v479, 1.442695
        %v481 = vpow.pop %v480
        %v482 = vadd.f32 %v481, 1.0
        %v483 = vrcp.pop %v482
        %v484 = vmul.f32 1.0, %v483
        %486 = vrot.lane.b32.xlu0 %v484, 112
        %v487 = vpop.permute.xlu0 %486
        %v489 = vadd.f32 %v484, %v487
        %v490 = vmul.f32 %v489, 2.9
        %v491 = vld [vmem:[%s307] sm:$0xff]
        %v492 = vadd.f32 %v490, %v491
        %v493 = vld [vmem:[%s5] sm:$0xff]
        %v494 = vld [vmem:[%s5 + $0x8] sm:$0xff]
        %v495 = vld [vmem:[%s6] sm:$0x1]
        %v497 = vlaneseq
        %v498 = vshrl.u32 %v497, 7
        %v499 = vsub.s32 0, %v498
        %v500 = vrot.slane %v495, %v499
        %v503 = vsel %vm469, %v492, 0
        %505 = vmatprep.subr.mxu0 0.0
        %506 = vmatpush1.msra.mxu0 0.0
        %507 = vmatprep.subr.mxu0 0.0
        %508 = vmatpush1.msra.mxu0 0.0
        %509 = vmatprep.subr.mxu0 0.0
        %510 = vmatpush1.msra.mxu0 0.0
        %511 = vmatprep.subr.mxu0 0.0
        %512 = vmatpush1.msra.mxu0 0.0
        %513 = vmatprep.subr.mxu0 0.0
        %514 = vmatpush1.msra.mxu0 0.0
        %515 = vmatprep.subr.mxu0 0.0
        %516 = vmatpush1.msra.mxu0 0.0
        %517 = vmatprep.subr.mxu0 0.0
        %518 = vmatpush1.msra.mxu0 0.0
        %519 = vmatprep.subr.mxu0 0.0
        %520 = vmatpush1.msra.mxu0 0.0
        %521 = vmatprep.subr.mxu0 0.0
        %522 = vmatpush1.msra.mxu0 0.0
        %523 = vmatprep.subr.mxu0 0.0
        %524 = vmatpush1.msra.mxu0 0.0
        %525 = vmatprep.subr.mxu0 0.0
        %526 = vmatpush1.msra.mxu0 0.0
        %527 = vmatprep.subr.mxu0 0.0
        %528 = vmatpush1.msra.mxu0 0.0
        %529 = vmatprep.subr.mxu0 0.0
        %530 = vmatpush1.msra.mxu0 0.0
        %531 = vmatprep.subr.mxu0 0.0
        %532 = vmatpush1.msra.mxu0 0.0
        %533 = vmatprep.subr.mxu0 0.0
        %534 = vmatpush1.msra.mxu0 %v494
        %535 = vmatprep.subr.mxu0 0.0
        %536 = vmatpush1.msra.mxu0 %v493
        %537 = vmatprep.subr.mxu0 0.0
        %538 = vmatpush2.msra.mxu0 0.0
        %539 = vmatprep.subr.mxu0 0.0
        %540 = vmatpush2.msra.mxu0 0.0
        %541 = vmatprep.subr.mxu0 0.0
        %542 = vmatpush2.msra.mxu0 0.0
        %543 = vmatprep.subr.mxu0 0.0
        %544 = vmatpush2.msra.mxu0 0.0
        %545 = vmatprep.subr.mxu0 0.0
        %546 = vmatpush2.msra.mxu0 0.0
        %547 = vmatprep.subr.mxu0 0.0
        %548 = vmatpush2.msra.mxu0 0.0
        %549 = vmatprep.subr.mxu0 0.0
        %550 = vmatpush2.msra.mxu0 0.0
        %551 = vmatprep.subr.mxu0 0.0
        %552 = vmatpush2.msra.mxu0 0.0
        %553 = vmatprep.subr.mxu0 0.0
        %554 = vmatpush2.msra.mxu0 0.0
        %555 = vmatprep.subr.mxu0 0.0
        %556 = vmatpush2.msra.mxu0 0.0
        %557 = vmatprep.subr.mxu0 0.0
        %558 = vmatpush2.msra.mxu0 0.0
        %559 = vmatprep.subr.mxu0 0.0
        %560 = vmatpush2.msra.mxu0 0.0
        %561 = vmatprep.subr.mxu0 0.0
        %562 = vmatpush2.msra.mxu0 0.0
        %563 = vmatprep.subr.mxu0 0.0
        %564 = vmatpush2.msra.mxu0 0.0
        %565 = vmatprep.subr.mxu0 0.0
        %566 = vmatpush2.msra.mxu0 0.0
        %567 = vmatprep.subr.mxu0 0.0
        %568 = vmatpush2.msra.mxu0 0.0
        %569 = vmatprep.mubr.f32.mxu0 0.0
        %570 = vmatmul.mubr.f32.gmra.mxu0 %v503
        %v571 = vpop.f32.mrf.mxu0
        %v572 = vadd.f32 %v500, %v571
        %v573 = vpop.f32.mrf.mxu0
        %574 = vdwg.mxu0
        %vm575 = vcmask 523264
        %576 = vst.msk [vmem:[%s295] sm:$0xff] %vm575, %v572
        %s577 = sand.u32 %s191, 1
        %s578 = scalar_lea.sflag [#allocation3], %s577
        %s579 = sand.u32 %s191, 1
        %s580 = smul.addr %s579, 8
        %s581 = scalar_lea.vmem [#allocation2], %s580
        // Predicated region
        $region49: #{tpu_custom_call.1} parent=47 // pred_check
          %p582 = pneg %p201
        $region50: #{tpu_custom_call.1} parent=47 // pred_check_branch
          %584 = sbr.rel (%p582) target = $region52
        $region51: #{tpu_custom_call.1} parent=47 // pred_region
          %s586 = ssub.s32 128, 128
          %587 = vsyncadd %s578, %s586
          %s588 = smul.addr %s21, 128
          %s589 = scalar_lea.hbm %s7, %s588
          %s591 = sshll.u32 %s581, 4
          %s592 = int_to_ptr.vmem [resolvable:$true] %s591
          %594 = dma.vmem_to_hbm [thread:$0]  %s592, 128, %s589, %s578
        $region52: #{tpu_custom_call.1} parent=47 // pred_fallthru
          _
      $region48: #{tpu_custom_call.1} parent=5 // pred_fallthru
        _
      %p595 = scmp.le.s32.totalorder 2, %s16
      // Predicated region
      $region53: #{tpu_custom_call.1} parent=5 // pred_check
        %p596 = pneg %p595
      $region54: #{tpu_custom_call.1} parent=5 // pred_check_branch
        %598 = sbr.rel (%p596) target = $region56
      $region55: #{tpu_custom_call.1} parent=5 // pred_region
        %s599 = ssub.s32 %s16, 2
        // Predicated region
        $region57: #{tpu_custom_call.1} parent=55 // pred_check
          %p600 = pneg %p207
        $region58: #{tpu_custom_call.1} parent=55 // pred_check_branch
          %602 = sbr.rel (%p600) target = $region60
        $region59: #{tpu_custom_call.1} parent=55 // pred_region
          %s603 = sand.u32 %s192, 1
          %s604 = scalar_lea.sflag [#allocation3], %s603
          %s605 = sand.u32 %s192, 1
          %s606 = smul.addr %s605, 8
          %s607 = scalar_lea.vmem [#allocation2], %s606
          %608 = dma.done %s604, 128
        $region60: #{tpu_custom_call.1} parent=55 // pred_fallthru
          _
      $region56: #{tpu_custom_call.1} parent=5 // pred_fallthru
        _
    $region6: #{tpu_custom_call.1} parent=1 // loop_footer
      %s20 = sadd.s32 1, %s16
    $region7: #{tpu_custom_call.1} parent=1 // loop_footer_branch
      %15 = sbr.rel target = $region3
    $region8: #{tpu_custom_call.1} parent=1 // loop_exit
      _
    %609 = vsyncpa [#allocation3], 1
    %s610 = scalar_lea.sflag [#allocation3], 1
    %611 = vsyncpa %s610, 1

</llo_original>
